<compile_context>
chip_gen: v5e
topology: v5e:2x2
jax: 0.10.0
libtpu: 0.0.40
codegen_flags: <defaults>
</compile_context>

<pallas_src>
import functools

import jax
import jax.numpy as jnp
from jax.experimental import pallas as pl
from jax.experimental.pallas import tpu as pltpu

_LANES = 128
_SUBLANES = 8


def _mura_loss_kernel(w_ref, n_ref, pred_ref, targ_ref, out_ref, sum_ref, *, has_pad):
    i = pl.program_id(0)

    @pl.when(i == 0)
    def _():
        sum_ref[0] = jnp.float32(0.0)

    eps = 1e-6
    p = jnp.clip(pred_ref[...].astype(jnp.float32), eps, 1.0 - eps)
    t = targ_ref[...].astype(jnp.float32)
    pw = w_ref[0]
    nw = w_ref[1]

    # loss = -(w_pos * t * log(p) + w_neg * (1 - t) * log(1 - p))
    loss = -(pw * t * jnp.log(p) + nw * (1.0 - t) * jnp.log(1.0 - p))

    if has_pad:
        # Mask out padded tail elements (they carry finite but bogus loss).
        # Static guard: when n % 128 == 0 there is no padding and no mask work.
        tb, lanes = loss.shape
        row = jax.lax.broadcasted_iota(jnp.int32, (tb, lanes), 0)
        col = jax.lax.broadcasted_iota(jnp.int32, (tb, lanes), 1)
        flat_idx = i * (tb * lanes) + row * lanes + col
        loss = jnp.where(flat_idx < n_ref[0], loss, 0.0)

    # Per-tile partial sum -> SMEM accumulator (XLU reduce, free next to VALU/EUP).
    sum_ref[0] += jnp.sum(loss)

    @pl.when(i == pl.num_programs(0) - 1)
    def _():
        out_ref[0, 0] = sum_ref[0] / n_ref[0].astype(jnp.float32)


def mura_loss(predictions, targets, weights, *, max_tile_rows=2048):
    """predictions, targets: any shape (same); weights: (pos_w, neg_w) scalars."""
    assert predictions.shape == targets.shape
    n = int(predictions.size)

    pred_flat = predictions.reshape(-1)
    targ_flat = targets.reshape(-1)

    # Lane-dense tiling: rows of 128 lanes, tile_rows a multiple of 8 sublanes.
    rows_needed = pl.cdiv(n, _LANES)
    tile_rows = min(int(max_tile_rows), pl.cdiv(rows_needed, _SUBLANES) * _SUBLANES)
    num_tiles = pl.cdiv(rows_needed, tile_rows)
    rows = num_tiles * tile_rows
    pad = rows * _LANES - n
    if pad:
        pred_flat = jnp.pad(pred_flat, (0, pad))
        targ_flat = jnp.pad(targ_flat, (0, pad))
    pred2d = pred_flat.reshape(rows, _LANES)
    targ2d = targ_flat.reshape(rows, _LANES)

    w = jnp.stack([jnp.asarray(weights[0], jnp.float32),
                   jnp.asarray(weights[1], jnp.float32)])
    n_arr = jnp.asarray([n], jnp.int32)

    kernel = functools.partial(_mura_loss_kernel, has_pad=bool(pad))

    out = pl.pallas_call(
        kernel,
        out_shape=jax.ShapeDtypeStruct((1, 1), jnp.float32),
        grid=(num_tiles,),
        in_specs=[
            pl.BlockSpec(memory_space=pltpu.SMEM),                     # (2,) weights
            pl.BlockSpec(memory_space=pltpu.SMEM),                     # (1,) true count
            pl.BlockSpec((tile_rows, _LANES), lambda i: (i, 0)),       # predictions
            pl.BlockSpec((tile_rows, _LANES), lambda i: (i, 0)),       # targets
        ],
        out_specs=pl.BlockSpec(memory_space=pltpu.SMEM),               # scalar mean loss
        scratch_shapes=[pltpu.SMEM((1,), jnp.float32)],                # running sum
        compiler_params=pltpu.CompilerParams(
            dimension_semantics=("arbitrary",)),
    )(w, n_arr, pred2d, targ2d)
    return out[0, 0]


def mura_loss_ref(predictions, targets, weights):
    eps = 1e-6
    p = jnp.clip(predictions.astype(jnp.float32), eps, 1.0 - eps)
    t = targets.astype(jnp.float32)
    pw = jnp.float32(weights[0])
    nw = jnp.float32(weights[1])
    loss = -(pw * t * jnp.log(p) + nw * (1.0 - t) * jnp.log(1.0 - p))
    return jnp.mean(loss)


if __name__ == "__main__":
    key = jax.random.PRNGKey(0)
    k1, k2, k3, k4 = jax.random.split(key, 4)
    weights = (0.6, 0.4)  # deterministic MURA-style (pos, neg) class weights

    # Small shape consistent with the module: batch=8, classes=16.
    B, C = 8, 16
    predictions = jax.random.uniform(k1, (B, C), jnp.float32, minval=0.0, maxval=1.0)
    targets = (jax.random.uniform(k2, (B, C), jnp.float32) > 0.5).astype(jnp.float32)

    loss = mura_loss(predictions, targets, weights)
    jax.block_until_ready(loss)
    ref = mura_loss_ref(predictions, targets, weights)
    assert jnp.allclose(loss, ref, atol=1e-5, rtol=1e-5), (loss, ref)

    # Odd-sized input (exercises padding/masking + multi-tile accumulation).
    B2, C2 = 300, 50
    p2 = jax.random.uniform(k3, (B2, C2), jnp.float32, minval=0.0, maxval=1.0)
    t2 = (jax.random.uniform(k4, (B2, C2), jnp.float32) > 0.5).astype(jnp.float32)
    loss2 = mura_loss(p2, t2, weights, max_tile_rows=16)  # force an 8-step grid
    jax.block_until_ready(loss2)
    ref2 = mura_loss_ref(p2, t2, weights)
    assert jnp.allclose(loss2, ref2, atol=1e-5, rtol=1e-5), (loss2, ref2)

    print("KERNEL_OK")
</pallas_src>

<mosaic_0001>
module attributes {stable_mosaic.version = 11 : i64} {
  func.func @_mura_loss_kernel(%arg0: i32, %arg1: memref<2xf32, #tpu.memory_space<smem>>, %arg2: memref<1xi32, #tpu.memory_space<smem>>, %arg3: memref<8x128xf32, #tpu.memory_space<vmem>>, %arg4: memref<8x128xf32, #tpu.memory_space<vmem>>, %arg5: memref<1x1xf32, #tpu.memory_space<smem>>, %arg6: memref<1xf32, #tpu.memory_space<smem>>) attributes {dimension_semantics = [#tpu.dimension_semantics<arbitrary>], iteration_bounds = array<i64: 1>, scalar_prefetch = 0 : i64, scratch_operands = 1 : i64, tpu.core_type = #tpu.core_type<tc>, window_params = [{transform_indices = @transform_0, window_bounds = array<i64: 2>}, {transform_indices = @transform_1, window_bounds = array<i64: 1>}, {transform_indices = @transform_2, window_bounds = array<i64: 8, 128>}, {transform_indices = @transform_3, window_bounds = array<i64: 8, 128>}, {transform_indices = @transform_4, window_bounds = array<i64: 1, 1>}]} {
    %c0_i32 = arith.constant 0 : i32
    %0 = arith.cmpi eq, %arg0, %c0_i32 : i32
    %1 = arith.extui %0 : i1 to i32
    %c0_i32_0 = arith.constant 0 : i32
    %2 = arith.cmpi ne, %1, %c0_i32_0 : i32
    scf.if %2 {
      %cst_16 = arith.constant 0.000000e+00 : f32
      %c0_17 = arith.constant 0 : index
      %49 = memref.load %arg6[%c0_17] : memref<1xf32, #tpu.memory_space<smem>>
      memref.store %cst_16, %arg6[%c0_17] : memref<1xf32, #tpu.memory_space<smem>>
    } else {
    }
    %c0 = arith.constant 0 : index
    %c0_1 = arith.constant 0 : index
    %3 = vector.load %arg3[%c0, %c0_1] : memref<8x128xf32, #tpu.memory_space<vmem>>, vector<8x128xf32>
    %cst = arith.constant 9.99999997E-7 : f32
    %cst_2 = arith.constant 0.999998986 : f32
    %4 = vector.broadcast %cst : f32 to vector<8x128xf32>
    %5 = arith.maximumf %4, %3 : vector<8x128xf32>
    %6 = vector.broadcast %cst_2 : f32 to vector<8x128xf32>
    %7 = arith.minimumf %6, %5 : vector<8x128xf32>
    %c0_3 = arith.constant 0 : index
    %c0_4 = arith.constant 0 : index
    %8 = vector.load %arg4[%c0_3, %c0_4] : memref<8x128xf32, #tpu.memory_space<vmem>>, vector<8x128xf32>
    %c0_5 = arith.constant 0 : index
    %9 = memref.load %arg1[%c0_5] : memref<2xf32, #tpu.memory_space<smem>>
    %c1 = arith.constant 1 : index
    %10 = memref.load %arg1[%c1] : memref<2xf32, #tpu.memory_space<smem>>
    %11 = vector.broadcast %9 : f32 to vector<8x128xf32>
    %12 = arith.mulf %11, %8 : vector<8x128xf32>
    %13 = math.log %7 : vector<8x128xf32>
    %14 = arith.mulf %12, %13 : vector<8x128xf32>
    %cst_6 = arith.constant 1.000000e+00 : f32
    %15 = vector.broadcast %cst_6 : f32 to vector<8x128xf32>
    %16 = arith.subf %15, %8 : vector<8x128xf32>
    %17 = vector.broadcast %10 : f32 to vector<8x128xf32>
    %18 = arith.mulf %17, %16 : vector<8x128xf32>
    %cst_7 = arith.constant 1.000000e+00 : f32
    %19 = vector.broadcast %cst_7 : f32 to vector<8x128xf32>
    %20 = arith.subf %19, %7 : vector<8x128xf32>
    %21 = math.log %20 : vector<8x128xf32>
    %22 = arith.mulf %18, %21 : vector<8x128xf32>
    %23 = arith.addf %14, %22 : vector<8x128xf32>
    %cst_8 = arith.constant 0.000000e+00 : f32
    %24 = vector.broadcast %cst_8 : f32 to vector<8x128xf32>
    %25 = arith.subf %24, %23 : vector<8x128xf32>
    %26 = tpu.iota {dimensions = array<i32: 0>} : vector<8x128xi32>
    %27 = tpu.iota {dimensions = array<i32: 1>} : vector<8x128xi32>
    %c1024_i32 = arith.constant 1024 : i32
    %28 = arith.muli %arg0, %c1024_i32 : i32
    %c128_i32 = arith.constant 128 : i32
    %29 = vector.broadcast %c128_i32 : i32 to vector<8x128xi32>
    %30 = arith.muli %26, %29 : vector<8x128xi32>
    %31 = vector.broadcast %28 : i32 to vector<8x128xi32>
    %32 = arith.addi %31, %30 : vector<8x128xi32>
    %33 = arith.addi %32, %27 : vector<8x128xi32>
    %c0_9 = arith.constant 0 : index
    %34 = memref.load %arg2[%c0_9] : memref<1xi32, #tpu.memory_space<smem>>
    %35 = vector.broadcast %34 : i32 to vector<8x128xi32>
    %36 = arith.cmpi slt, %33, %35 : vector<8x128xi32>
    %cst_10 = arith.constant 0.000000e+00 : f32
    %37 = vector.broadcast %cst_10 : f32 to vector<8x128xf32>
    %38 = arith.select %36, %25, %37 : vector<8x128xi1>, vector<8x128xf32>
    %c0_11 = arith.constant 0 : index
    %39 = memref.load %arg6[%c0_11] : memref<1xf32, #tpu.memory_space<smem>>
    %40 = vector.shape_cast %38 : vector<8x128xf32> to vector<1x8x128xf32>
    %cst_12 = arith.constant dense<0.000000e+00> : vector<1xf32>
    %41 = vector.multi_reduction <add>, %40, %cst_12 [1, 2] : vector<1x8x128xf32> to vector<1xf32>
    %42 = vector.shape_cast %41 : vector<1xf32> to vector<1x1x1xf32>
    %43 = vector.extract %42[0, 0, 0] : f32 from vector<1x1x1xf32>
    %44 = arith.addf %39, %43 : f32
    %c0_13 = arith.constant 0 : index
    %45 = memref.load %arg6[%c0_13] : memref<1xf32, #tpu.memory_space<smem>>
    memref.store %44, %arg6[%c0_13] : memref<1xf32, #tpu.memory_space<smem>>
    %c0_i32_14 = arith.constant 0 : i32
    %46 = arith.cmpi eq, %arg0, %c0_i32_14 : i32
    %47 = arith.extui %46 : i1 to i32
    %c0_i32_15 = arith.constant 0 : i32
    %48 = arith.cmpi ne, %47, %c0_i32_15 : i32
    scf.if %48 {
      %c0_16 = arith.constant 0 : index
      %49 = memref.load %arg6[%c0_16] : memref<1xf32, #tpu.memory_space<smem>>
      %c0_17 = arith.constant 0 : index
      %50 = memref.load %arg2[%c0_17] : memref<1xi32, #tpu.memory_space<smem>>
      %51 = arith.sitofp %50 : i32 to f32
      %52 = arith.divf %49, %51 : f32
      %c0_18 = arith.constant 0 : index
      %c0_19 = arith.constant 0 : index
      %53 = memref.load %arg5[%c0_18, %c0_19] : memref<1x1xf32, #tpu.memory_space<smem>>
      memref.store %52, %arg5[%c0_18, %c0_19] : memref<1x1xf32, #tpu.memory_space<smem>>
    } else {
    }
    return
  }
  func.func @transform_0(%arg0: i32) -> i32 {
    %c0_i32 = arith.constant 0 : i32
    %c0_i32_0 = arith.constant 0 : i32
    return %c0_i32 : i32
  }
  func.func @transform_1(%arg0: i32) -> i32 {
    %c0_i32 = arith.constant 0 : i32
    %c0_i32_0 = arith.constant 0 : i32
    return %c0_i32 : i32
  }
  func.func @transform_2(%arg0: i32) -> (i32, i32) {
    %c0_i32 = arith.constant 0 : i32
    %c0_i32_0 = arith.constant 0 : i32
    return %arg0, %c0_i32 : i32, i32
  }
  func.func @transform_3(%arg0: i32) -> (i32, i32) {
    %c0_i32 = arith.constant 0 : i32
    %c0_i32_0 = arith.constant 0 : i32
    return %arg0, %c0_i32 : i32, i32
  }
  func.func @transform_4(%arg0: i32) -> (i32, i32) {
    %c0_i32 = arith.constant 0 : i32
    %c0_i32_0 = arith.constant 0 : i32
    %c0_i32_1 = arith.constant 0 : i32
    return %c0_i32, %c0_i32_0 : i32, i32
  }
}

</mosaic_0001>

<llo_original>
// kernel: tpu_custom_call.1
$region0: #{tpu_custom_call.1}
  #allocation0 [shape = 'u32[]', space=smem, size = 0x4, offset = 0x4, fixed_abs, tag = 'smem constant byte address 0x4 - core index']
  #allocation1 [shape = 'u32[72,128]{1,0:T(1,128)}', space=vmem, size = 0x9000, scoped, tag = 'internal scratch']
  #allocation2 [shape = 'f32[1]{0:T(128)}', space=smem, size = 0x200, scoped, tag = 'scratch operand']
  #allocation3 [shape = 's32[1]{0:T(128)S(6)}', space=smem, size = 0x200, scoped, tag = 'scoped memory for tpu_custom_call.1']
  %s0 = inlined_call_operand.vmem [shape: f32[2], index: 0, kind: input, shape index: {}]
  %s1 = inlined_call_operand.<no memory space> [shape: s32[1], index: 1, kind: input, shape index: {}]
  %s2 = inlined_call_operand.hbm [shape: f32[8,128], index: 2, kind: input, shape index: {}]
  %s3 = inlined_call_operand.hbm [shape: f32[8,128], index: 3, kind: input, shape index: {}]
  %s4 = inlined_call_operand.hbm [shape: f32[1,1], index: 4, kind: output, shape index: {}]
  %s5 = sld [smem:[#allocation0]]
  $region46: #{tpu_custom_call.1} parent=0
    _
  %s7 = ssub.s32 1, %s5
  %s8 = scalar_select 0, %s7, %s5
  %9 = sst [smem:[#allocation3]] %s1
  $region1: #{tpu_custom_call.1} parent=0
    #allocation4 [shape = 'u8[512]{0}', space=smem, size = 0x200, scoped, tag = 'input window, operand 0, single buffered']
    #allocation5 [shape = 's32[1]{0}', space=sflag, size = 0x4, scoped, tag = 'scoped memory for tpu_custom_call.1']
    #allocation6 [shape = 's32[1]{0}', space=sflag, size = 0x4, scoped, tag = 'scoped memory for tpu_custom_call.1']
    #allocation7 [shape = 's32[1]{0}', space=sflag, size = 0x4, scoped, tag = 'scoped memory for tpu_custom_call.1']
    #allocation8 [shape = 'u8[4096]{0}', space=vmem, size = 0x1000, scoped, tag = 'input window, operand 2, single buffered']
    #allocation9 [shape = 'u8[4096]{0}', space=vmem, size = 0x1000, scoped, tag = 'input window, operand 3, single buffered']
    #allocation10 [shape = 's32[1]{0}', space=sflag, size = 0x4, scoped, tag = 'scoped memory for tpu_custom_call.1']
    #allocation11 [shape = 'u8[512]{0}', space=smem, size = 0x200, scoped, tag = 'output window, operand 0, single buffered']
    %10 = vsyncpa [#allocation7], 0
    %11 = vsyncpa [#allocation5], 0
    %12 = vsyncpa [#allocation10], 0
    %13 = vsyncpa [#allocation6], 0
    // Predicated region
    $region2: #{tpu_custom_call.1} parent=1 // pred_check
      _
    $region3: #{tpu_custom_call.1} parent=1 // pred_check_branch
      %15 = sbr.rel (0) target = $region5
    $region4: #{tpu_custom_call.1} parent=1 // pred_region
      %17 = vsyncadd [#allocation7], 0
      %s19 = sshll.u32 %s0, 4
      %s20 = int_to_ptr.vmem [resolvable:$true] %s19
      %22 = dma.vmem_to_smem %s20, 16, [#allocation4], [#allocation7]
    $region5: #{tpu_custom_call.1} parent=1 // pred_fallthru
      _
    // Predicated region
    $region6: #{tpu_custom_call.1} parent=1 // pred_check
      _
    $region7: #{tpu_custom_call.1} parent=1 // pred_check_branch
      %24 = sbr.rel (0) target = $region9
    $region8: #{tpu_custom_call.1} parent=1 // pred_region
      _
    $region9: #{tpu_custom_call.1} parent=1 // pred_fallthru
      _
    // Predicated region
    $region10: #{tpu_custom_call.1} parent=1 // pred_check
      _
    $region11: #{tpu_custom_call.1} parent=1 // pred_check_branch
      %26 = sbr.rel (0) target = $region13
    $region12: #{tpu_custom_call.1} parent=1 // pred_region
      %28 = vsyncadd [#allocation5], 0
      %s30 = sshll.u32 %s2, 4
      %s31 = int_to_ptr.hbm [resolvable:$true] %s30
      %s32 = sshll.u32 [#allocation8], 4
      %s33 = int_to_ptr.vmem [resolvable:$true] %s32
      %35 = dma.hbm_to_vmem [thread:$0]  %s31, 128, %s33, [#allocation5]
    $region13: #{tpu_custom_call.1} parent=1 // pred_fallthru
      _
    // Predicated region
    $region14: #{tpu_custom_call.1} parent=1 // pred_check
      _
    $region15: #{tpu_custom_call.1} parent=1 // pred_check_branch
      %37 = sbr.rel (0) target = $region17
    $region16: #{tpu_custom_call.1} parent=1 // pred_region
      %39 = vsyncadd [#allocation10], 0
      %s41 = sshll.u32 %s3, 4
      %s42 = int_to_ptr.hbm [resolvable:$true] %s41
      %s43 = sshll.u32 [#allocation9], 4
      %s44 = int_to_ptr.vmem [resolvable:$true] %s43
      %46 = dma.hbm_to_vmem [thread:$0]  %s42, 128, %s44, [#allocation10]
    $region17: #{tpu_custom_call.1} parent=1 // pred_fallthru
      _
    // Predicated region
    $region18: #{tpu_custom_call.1} parent=1 // pred_check
      _
    $region19: #{tpu_custom_call.1} parent=1 // pred_check_branch
      %48 = sbr.rel (0) target = $region21
    $region20: #{tpu_custom_call.1} parent=1 // pred_region
      %50 = dma.done [#allocation7], 16
    $region21: #{tpu_custom_call.1} parent=1 // pred_fallthru
      _
    // Predicated region
    $region22: #{tpu_custom_call.1} parent=1 // pred_check
      _
    $region23: #{tpu_custom_call.1} parent=1 // pred_check_branch
      %52 = sbr.rel (0) target = $region25
    $region24: #{tpu_custom_call.1} parent=1 // pred_region
      %54 = dma.done [#allocation5], 128
    $region25: #{tpu_custom_call.1} parent=1 // pred_fallthru
      _
    // Predicated region
    $region26: #{tpu_custom_call.1} parent=1 // pred_check
      _
    $region27: #{tpu_custom_call.1} parent=1 // pred_check_branch
      %56 = sbr.rel (0) target = $region29
    $region28: #{tpu_custom_call.1} parent=1 // pred_region
      %58 = dma.done [#allocation10], 128
    $region29: #{tpu_custom_call.1} parent=1 // pred_fallthru
      _
    %59 = sfence
    %p60 = scmp.eq.s32.totalorder 0, 0
    // Predicated region
    $region30: #{tpu_custom_call.1} parent=1 // pred_check
      %p61 = pneg %p60
    $region31: #{tpu_custom_call.1} parent=1 // pred_check_branch
      %63 = sbr.rel (%p61) target = $region33
    $region32: #{tpu_custom_call.1} parent=1 // pred_region
      %s64 = scalar_lea.smem [#allocation2], 0
      %65 = sst [smem:[%s64]] 0.0
    $region33: #{tpu_custom_call.1} parent=1 // pred_fallthru
      _
    %v66 = vld [vmem:[#allocation8] sm:$0xff]
    %v67 = vmax.f32 %v66, 1e-06
    %v68 = vmin.f32 %v67, 0.999999
    %v69 = vld [vmem:[#allocation9] sm:$0xff]
    %s70 = sld [smem:[#allocation4]]
    %s71 = sld [smem:[#allocation4 + $0x1]]
    %v72 = vstv %s70
    %v73 = vmul.f32 %v72, %v69
    %v74 = vlog2.pop %v68
    %v75 = vmul.f32 %v74, 0.6931472
    %v76 = vmul.f32 %v73, %v75
    %v77 = vsub.f32 1.0, %v69
    %v78 = vstv %s71
    %v79 = vmul.f32 %v78, %v77
    %v80 = vsub.f32 1.0, %v68
    %v81 = vlog2.pop %v80
    %v82 = vmul.f32 %v81, 0.6931472
    %v83 = vmul.f32 %v79, %v82
    %v84 = vadd.f32 %v76, %v83
    %v85 = vsub.f32 0.0, %v84
    %v86 = vlaneseq
    %v87 = vshrl.u32 %v86, 7
    %v88 = vlaneseq
    %v89 = vand.u32 %v88, 127
    %s90 = smul.u32 0, 1024
    %v91 = vmul.u32 %v87, 128
    %v92 = vstv %s90
    %v93 = vadd.s32 %v92, %v91
    %v94 = vadd.s32 %v93, %v89
    %s95 = sld [smem:[#allocation3]]
    %v96 = vstv %s95
    %vm97 = vcmp.lt.s32.totalorder %v94, %v96
    %v98 = vsel %vm97, %v85, 0.0
    %s99 = sld [smem:[#allocation2]]
    %100 = vadd.xlane.f32.xlu0 %v98
    %v101 = vpop.xlane.xlu0 %100
    %v102 = vrot.slane %v101, 4
    %v103 = vadd.f32 %v101, %v102
    %v104 = vrot.slane %v103, 2
    %v105 = vadd.f32 %v103, %v104
    %v106 = vrot.slane %v105, 1
    %v107 = vadd.f32 %v105, %v106
    %s108 = vtos %v107
    %s109 = sadd.f32 %s99, %s108
    %s110 = scalar_lea.smem [#allocation2], 0
    %111 = sst [smem:[%s110]] %s109
    // Predicated region
    $region34: #{tpu_custom_call.1} parent=1 // pred_check
      %p112 = pneg %p60
    $region35: #{tpu_custom_call.1} parent=1 // pred_check_branch
      %114 = sbr.rel (%p112) target = $region37
    $region36: #{tpu_custom_call.1} parent=1 // pred_region
      %s115 = sld [smem:[#allocation2]]
      %s116 = sld [smem:[#allocation3]]
      %s117 = scvt.s32.f32 %s116
      %v118 = vstv %s117
      %v119 = vrcp.pop %v118
      %v120 = vmul.f32 %v118, %v119
      %v121 = vsub.f32 1.0, %v120
      %v122 = vmul.f32 %v119, %v121
      %v123 = vadd.f32 %v119, %v122
      %vm124 = vweird.f32 %v118
      %vm125 = vweird.f32 %v119
      %vm126 = vmor %vm124, %vm125
      %v127 = vsel %vm126, %v119, %v123
      %v128 = vand.u32 2147483647, %v118
      %vm129 = vcmp.eq.f32.partialorder %v128, 8.507059e+37
      %v130 = vand.u32 %v118, 2147483648
      %v131 = vor.u32 1.1754944e-38, %v130
      %v132 = vsel %vm129, %v131, %v127
      %s133 = vtos %v132
      %s134 = smul.f32 %s115, %s133
      %s135 = scalar_lea.smem [#allocation11], 0
      %136 = sst [smem:[%s135]] %s134
    $region37: #{tpu_custom_call.1} parent=1 // pred_fallthru
      _
    // Predicated region
    $region38: #{tpu_custom_call.1} parent=1 // pred_check
      _
    $region39: #{tpu_custom_call.1} parent=1 // pred_check_branch
      %138 = sbr.rel (0) target = $region41
    $region40: #{tpu_custom_call.1} parent=1 // pred_region
      %140 = vsyncadd [#allocation6], 0
      %s142 = sshll.u32 %s4, 4
      %s143 = int_to_ptr.hbm [resolvable:$true] %s142
      %145 = dma.smem_to_hbm [#allocation11], 16, %s143, [#allocation6]
    $region41: #{tpu_custom_call.1} parent=1 // pred_fallthru
      _
    // Predicated region
    $region42: #{tpu_custom_call.1} parent=1 // pred_check
      _
    $region43: #{tpu_custom_call.1} parent=1 // pred_check_branch
      %147 = sbr.rel (0) target = $region45
    $region44: #{tpu_custom_call.1} parent=1 // pred_region
      %149 = dma.done [#allocation6], 16
    $region45: #{tpu_custom_call.1} parent=1 // pred_fallthru
      _
    %150 = sfence
    %151 = vsyncpa [#allocation5], 1
    %152 = vsyncpa [#allocation10], 1
    %153 = vsyncpa [#allocation6], 1
    %154 = vsyncpa [#allocation7], 1

</llo_original>
